<compile_context>
chip_gen: v7x
topology: tpu7x:2x2x1
jax: 0.10.0
libtpu: 0.0.40
codegen_flags: <defaults>
</compile_context>

<pallas_src>
import math

import jax
import jax.numpy as jnp
from jax.experimental import pallas as pl
from jax.experimental.pallas import tpu as pltpu


# ---------------------------------------------------------------------------
# Parameter initialization (mirrors EllipticalModelNode.init_gate_params,
# deterministic, no checkpoint loading).
# ---------------------------------------------------------------------------
def _log_odds_ratio(p):
    if p < 1e-10:
        return -10.0
    if p > 1.0 - 1e-10:
        return 10.0
    return math.log(p / (1.0 - p))


def init_elliptical_params(init_tree):
    """init_tree = [[name1, low1, upp1], [name2, low2, upp2]] (as in the repo)."""
    x_dist = init_tree[0][2] - init_tree[0][1]
    y_dist = init_tree[1][2] - init_tree[1][1]
    center = [init_tree[0][1] + x_dist / 2.0, init_tree[1][1] + y_dist / 2.0]
    a = x_dist / (2.0 ** 0.5)
    b = y_dist / (2.0 ** 0.5)
    theta = math.pi
    return {
        "center1_param": jnp.float32(_log_odds_ratio(center[0])),
        "center2_param": jnp.float32(_log_odds_ratio(center[1])),
        "a_param": jnp.float32(_log_odds_ratio(a)),
        "b_param": jnp.float32(_log_odds_ratio(b)),
        "theta_param": jnp.float32(_log_odds_ratio(theta / (2.0 * math.pi))),
    }


# ---------------------------------------------------------------------------
# Pallas kernel: per-cell ellipse-surface distance + logsigmoid.
# Purely elementwise VPU/EUP work on full (TILE_R, 128) tiles.
# ---------------------------------------------------------------------------
def ellipse_logp_kernel(p_ref, x0_ref, x1_ref, o_ref):
    # p_ref (SMEM, shape (8,)): [c1, c2, cos(-theta), sin(-theta), a^2, b^2, a*b, k]
    c1 = p_ref[0]
    c2 = p_ref[1]
    cos_nt = p_ref[2]
    sin_nt = p_ref[3]
    a2 = p_ref[4]
    b2 = p_ref[5]
    ab = p_ref[6]
    k = p_ref[7]

    # shift + rotate by -theta
    x0 = x0_ref[...] - c1
    x1 = x1_ref[...] - c2
    xr = x0 * cos_nt - x1 * sin_nt
    yr = x0 * sin_nt + x1 * cos_nt

    # Distance from point to the ellipse surface along the ray through the
    # center:  dist = dc - a*b*dc / sqrt(a^2*yr^2 + b^2*xr^2)
    # (identical to the quadratic-root formulation of the reference module,
    #  and handles the xr == 0 vertical case automatically: dist = dc - b).
    dc = jnp.sqrt(xr * xr + yr * yr)
    inv = jax.lax.rsqrt(a2 * (yr * yr) + b2 * (xr * xr))
    dist = dc * (1.0 - ab * inv)

    # logsigmoid(-k * dist)
    o_ref[...] = jax.nn.log_sigmoid(-k * dist)


# ---------------------------------------------------------------------------
# Wrapper: param transforms (sigmoid / trig hoisting), layout, pallas_call.
# ---------------------------------------------------------------------------
def elliptical_model_node_forward(params, x, logistic_k, *, tile_rows=1024):
    """x: (n_cell, 2) float32. Returns (logp, 0, 0, 0, 0) like the PyTorch module."""
    n = x.shape[0]

    # Pad cells so they fill whole (rows, 128) planes with rows % 8 == 0.
    rows = -(-n // 128)                      # ceil(n / 128)
    rows = max(8, ((rows + 7) // 8) * 8)     # multiple of 8
    if rows > tile_rows:
        rows = ((rows + tile_rows - 1) // tile_rows) * tile_rows
        tr = tile_rows
    else:
        tr = rows
    n_pad = rows * 128

    # Parameter transforms + trig hoisted out of the kernel (computed once
    # in XLA, shipped through SMEM).
    c1 = jax.nn.sigmoid(params["center1_param"])
    c2 = jax.nn.sigmoid(params["center2_param"])
    a = jax.nn.sigmoid(params["a_param"])
    b = jax.nn.sigmoid(params["b_param"])
    theta = 2.0 * math.pi * jax.nn.sigmoid(params["theta_param"])

    p_vec = jnp.stack(
        [c1, c2, jnp.cos(-theta), jnp.sin(-theta),
         a * a, b * b, a * b, jnp.asarray(logistic_k, jnp.float32)]
    ).astype(jnp.float32)

    # Lane/sublane-dense planes: flat cell index c -> (row c // 128, lane c % 128).
    # TODO(synk): for very large N on v6e/v7x, stream these planes as bf16 and
    # upcast in-kernel to halve HBM traffic (keep f32 on v5e).
    xf = x.astype(jnp.float32)
    x0_plane = jnp.zeros((n_pad,), jnp.float32).at[:n].set(xf[:, 0]).reshape(rows, 128)
    x1_plane = jnp.zeros((n_pad,), jnp.float32).at[:n].set(xf[:, 1]).reshape(rows, 128)

    logp_plane = pl.pallas_call(
        ellipse_logp_kernel,
        out_shape=jax.ShapeDtypeStruct((rows, 128), jnp.float32),
        grid=(rows // tr,),
        in_specs=[
            pl.BlockSpec(memory_space=pltpu.MemorySpace.SMEM),   # p_vec (untiled)
            pl.BlockSpec((tr, 128), lambda i: (i, 0)),           # x0 plane
            pl.BlockSpec((tr, 128), lambda i: (i, 0)),           # x1 plane
        ],
        out_specs=pl.BlockSpec((tr, 128), lambda i: (i, 0)),
        compiler_params=pltpu.CompilerParams(
            dimension_semantics=("parallel",)),
    )(p_vec, x0_plane, x1_plane)

    logp = logp_plane.reshape(-1)[:n]
    # Elliptical node: all reg penalties are literal 0 in the reference module.
    # TODO(synk): when many gates share the same cells, batch all nodes'
    # params into one pallas_call (nodes x row-tiles grid) to amortize launch
    # overhead; out of scope for a single-module forward.
    return logp, 0.0, 0.0, 0.0, 0.0


# ---------------------------------------------------------------------------
# Pure-JAX reference implementing the ORIGINAL quadratic-intersection math of
# the PyTorch module (for a correctness sanity check of the simplified form).
# ---------------------------------------------------------------------------
def _reference_logp(params, x, logistic_k):
    c1 = jax.nn.sigmoid(params["center1_param"])
    c2 = jax.nn.sigmoid(params["center2_param"])
    a = jax.nn.sigmoid(params["a_param"])
    b = jax.nn.sigmoid(params["b_param"])
    theta = 2.0 * math.pi * jax.nn.sigmoid(params["theta_param"])

    xs = x - jnp.stack([c1, c2])[None, :]
    xr = xs[:, 0] * jnp.cos(-theta) - xs[:, 1] * jnp.sin(-theta)
    yr = xs[:, 0] * jnp.sin(-theta) + xs[:, 1] * jnp.cos(-theta)
    slope = yr / xr
    yi = jnp.zeros_like(yr)
    aq = a * a * slope * slope + b * b
    bq = 2.0 * a * a * slope * yi
    cq = -(a * a) * (b * b)
    disc = jnp.sqrt(bq * bq - 4.0 * aq * cq)
    xs1 = (-bq + disc) / (2.0 * aq)
    xs2 = (-bq - disc) / (2.0 * aq)
    ys1 = slope * xs1 + yi
    ys2 = slope * xs2 + yi
    d1 = jnp.sqrt(ys1 * ys1 + xs1 * xs1)
    d2 = jnp.sqrt(ys2 * ys2 + xs2 * xs2)
    dc = jnp.sqrt(xr * xr + yr * yr)
    non_vert = jnp.where(jnp.sign(ys1) == jnp.sign(yr), dc - d1, dc - d2)
    dist = jnp.where(xr == 0.0, dc - b, non_vert)
    return jax.nn.log_sigmoid(-logistic_k * dist)


if __name__ == "__main__":
    # Deterministic "init_tree" analogous to the repo's nested-list gates.
    init_tree = [["D1", 0.2, 0.6], ["D2", 0.3, 0.7]]
    params = init_elliptical_params(init_tree)
    logistic_k = 10.0

    key = jax.random.PRNGKey(0)
    k1, k2 = jax.random.split(key)

    # --- small case (single tile) -----------------------------------------
    n_cell = 200
    x = jax.random.uniform(k1, (n_cell, 2), dtype=jnp.float32)  # cells in [0,1]^2
    logp, ref_reg, init_reg, size_reg, corner_reg = elliptical_model_node_forward(
        params, x, logistic_k
    )
    logp = jax.block_until_ready(logp)
    ref = _reference_logp(params, x, logistic_k)
    assert logp.shape == (n_cell,)
    assert jnp.allclose(logp, ref, rtol=1e-4, atol=1e-4), "mismatch vs reference (small)"

    # --- multi-tile grid path (small tile override to exercise pipelining) --
    n_cell2 = 2000
    x2 = jax.random.uniform(k2, (n_cell2, 2), dtype=jnp.float32)
    logp2, *_ = elliptical_model_node_forward(params, x2, logistic_k, tile_rows=8)
    logp2 = jax.block_until_ready(logp2)
    ref2 = _reference_logp(params, x2, logistic_k)
    assert logp2.shape == (n_cell2,)
    assert jnp.allclose(logp2, ref2, rtol=1e-4, atol=1e-4), "mismatch vs reference (tiled)"

    print("KERNEL_OK")
</pallas_src>

<mosaic_0001>
module attributes {stable_mosaic.version = 11 : i64} {
  func.func @ellipse_logp_kernel(%arg0: i32, %arg1: memref<8xf32, #tpu.memory_space<smem>>, %arg2: memref<8x128xf32, #tpu.memory_space<vmem>>, %arg3: memref<8x128xf32, #tpu.memory_space<vmem>>, %arg4: memref<8x128xf32, #tpu.memory_space<vmem>>) attributes {dimension_semantics = [#tpu.dimension_semantics<parallel>], iteration_bounds = array<i64: 1>, scalar_prefetch = 0 : i64, scratch_operands = 0 : i64, tpu.core_type = #tpu.core_type<tc>, window_params = [{transform_indices = @transform_0, window_bounds = array<i64: 8>}, {transform_indices = @transform_1, window_bounds = array<i64: 8, 128>}, {transform_indices = @transform_2, window_bounds = array<i64: 8, 128>}, {transform_indices = @transform_3, window_bounds = array<i64: 8, 128>}]} {
    %c0 = arith.constant 0 : index
    %0 = memref.load %arg1[%c0] : memref<8xf32, #tpu.memory_space<smem>>
    %c1 = arith.constant 1 : index
    %1 = memref.load %arg1[%c1] : memref<8xf32, #tpu.memory_space<smem>>
    %c2 = arith.constant 2 : index
    %2 = memref.load %arg1[%c2] : memref<8xf32, #tpu.memory_space<smem>>
    %c3 = arith.constant 3 : index
    %3 = memref.load %arg1[%c3] : memref<8xf32, #tpu.memory_space<smem>>
    %c4 = arith.constant 4 : index
    %4 = memref.load %arg1[%c4] : memref<8xf32, #tpu.memory_space<smem>>
    %c5 = arith.constant 5 : index
    %5 = memref.load %arg1[%c5] : memref<8xf32, #tpu.memory_space<smem>>
    %c6 = arith.constant 6 : index
    %6 = memref.load %arg1[%c6] : memref<8xf32, #tpu.memory_space<smem>>
    %c7 = arith.constant 7 : index
    %7 = memref.load %arg1[%c7] : memref<8xf32, #tpu.memory_space<smem>>
    %c0_0 = arith.constant 0 : index
    %c0_1 = arith.constant 0 : index
    %8 = vector.load %arg2[%c0_0, %c0_1] : memref<8x128xf32, #tpu.memory_space<vmem>>, vector<8x128xf32>
    %9 = vector.broadcast %0 : f32 to vector<8x128xf32>
    %10 = arith.subf %8, %9 : vector<8x128xf32>
    %c0_2 = arith.constant 0 : index
    %c0_3 = arith.constant 0 : index
    %11 = vector.load %arg3[%c0_2, %c0_3] : memref<8x128xf32, #tpu.memory_space<vmem>>, vector<8x128xf32>
    %12 = vector.broadcast %1 : f32 to vector<8x128xf32>
    %13 = arith.subf %11, %12 : vector<8x128xf32>
    %14 = vector.broadcast %2 : f32 to vector<8x128xf32>
    %15 = arith.mulf %10, %14 : vector<8x128xf32>
    %16 = vector.broadcast %3 : f32 to vector<8x128xf32>
    %17 = arith.mulf %13, %16 : vector<8x128xf32>
    %18 = arith.subf %15, %17 : vector<8x128xf32>
    %19 = vector.broadcast %3 : f32 to vector<8x128xf32>
    %20 = arith.mulf %10, %19 : vector<8x128xf32>
    %21 = vector.broadcast %2 : f32 to vector<8x128xf32>
    %22 = arith.mulf %13, %21 : vector<8x128xf32>
    %23 = arith.addf %20, %22 : vector<8x128xf32>
    %24 = arith.mulf %18, %18 : vector<8x128xf32>
    %25 = arith.mulf %23, %23 : vector<8x128xf32>
    %26 = arith.addf %24, %25 : vector<8x128xf32>
    %27 = math.sqrt %26 : vector<8x128xf32>
    %28 = arith.mulf %23, %23 : vector<8x128xf32>
    %29 = vector.broadcast %4 : f32 to vector<8x128xf32>
    %30 = arith.mulf %29, %28 : vector<8x128xf32>
    %31 = arith.mulf %18, %18 : vector<8x128xf32>
    %32 = vector.broadcast %5 : f32 to vector<8x128xf32>
    %33 = arith.mulf %32, %31 : vector<8x128xf32>
    %34 = arith.addf %30, %33 : vector<8x128xf32>
    %35 = math.rsqrt %34 : vector<8x128xf32>
    %36 = vector.broadcast %6 : f32 to vector<8x128xf32>
    %37 = arith.mulf %36, %35 : vector<8x128xf32>
    %cst = arith.constant 1.000000e+00 : f32
    %38 = vector.broadcast %cst : f32 to vector<8x128xf32>
    %39 = arith.subf %38, %37 : vector<8x128xf32>
    %40 = arith.mulf %27, %39 : vector<8x128xf32>
    %cst_4 = arith.constant 0.000000e+00 : f32
    %41 = arith.subf %cst_4, %7 : f32
    %42 = vector.broadcast %41 : f32 to vector<8x128xf32>
    %43 = arith.mulf %42, %40 : vector<8x128xf32>
    %cst_5 = arith.constant 0.000000e+00 : f32
    %44 = vector.broadcast %cst_5 : f32 to vector<8x128xf32>
    %45 = arith.subf %44, %43 : vector<8x128xf32>
    %cst_6 = arith.constant 0.000000e+00 : f32
    %46 = vector.broadcast %cst_6 : f32 to vector<8x128xf32>
    %47 = arith.maximumf %45, %46 : vector<8x128xf32>
    %48 = vector.broadcast %cst_6 : f32 to vector<8x128xf32>
    %49 = arith.subf %45, %48 : vector<8x128xf32>
    %50 = arith.cmpf one, %49, %49 : vector<8x128xf32>
    %51 = vector.broadcast %cst_6 : f32 to vector<8x128xf32>
    %52 = arith.addf %45, %51 : vector<8x128xf32>
    %53 = math.absf %49 : vector<8x128xf32>
    %cst_7 = arith.constant 0.000000e+00 : f32
    %54 = vector.broadcast %cst_7 : f32 to vector<8x128xf32>
    %55 = arith.subf %54, %53 : vector<8x128xf32>
    %56 = math.exp %55 : vector<8x128xf32>
    %57 = math.log1p %56 : vector<8x128xf32>
    %58 = arith.addf %47, %57 : vector<8x128xf32>
    %59 = arith.select %50, %52, %58 : vector<8x128xi1>, vector<8x128xf32>
    %cst_8 = arith.constant 0.000000e+00 : f32
    %60 = vector.broadcast %cst_8 : f32 to vector<8x128xf32>
    %61 = arith.subf %60, %59 : vector<8x128xf32>
    %c0_9 = arith.constant 0 : index
    %c0_10 = arith.constant 0 : index
    %62 = vector.load %arg4[%c0_9, %c0_10] : memref<8x128xf32, #tpu.memory_space<vmem>>, vector<8x128xf32>
    tpu.vector_store %arg4[%c0_9, %c0_10], %61 {strides = array<i32>} : memref<8x128xf32, #tpu.memory_space<vmem>>, vector<8x128xf32>,
    return
  }
  func.func @transform_0(%arg0: i32) -> i32 {
    %c0_i32 = arith.constant 0 : i32
    %c0_i32_0 = arith.constant 0 : i32
    return %c0_i32 : i32
  }
  func.func @transform_1(%arg0: i32) -> (i32, i32) {
    %c0_i32 = arith.constant 0 : i32
    %c0_i32_0 = arith.constant 0 : i32
    return %arg0, %c0_i32 : i32, i32
  }
  func.func @transform_2(%arg0: i32) -> (i32, i32) {
    %c0_i32 = arith.constant 0 : i32
    %c0_i32_0 = arith.constant 0 : i32
    return %arg0, %c0_i32 : i32, i32
  }
  func.func @transform_3(%arg0: i32) -> (i32, i32) {
    %c0_i32 = arith.constant 0 : i32
    %c0_i32_0 = arith.constant 0 : i32
    return %arg0, %c0_i32 : i32, i32
  }
}

</mosaic_0001>

<llo_original>
// kernel: tpu_custom_call.1
$region0: #{tpu_custom_call.1}
  #allocation0 [shape = 'u32[]', space=smem, size = 0x4, offset = 0x4, fixed_abs, tag = 'smem constant byte address 0x4 - core index']
  #allocation1 [shape = 'u32[144,128]{1,0:T(1,128)}', space=vmem, size = 0x12000, scoped, tag = 'internal scratch']
  %s0 = inlined_call_operand.hbm [shape: f32[8], index: 0, kind: input, shape index: {}]
  %s1 = inlined_call_operand.hbm [shape: f32[8,128], index: 1, kind: input, shape index: {}]
  %s2 = inlined_call_operand.hbm [shape: f32[8,128], index: 2, kind: input, shape index: {}]
  %s3 = inlined_call_operand.hbm [shape: f32[8,128], index: 3, kind: output, shape index: {}]
  %s4 = sld [smem:[#allocation0]]
  $region34: #{tpu_custom_call.1} parent=0
    _
  %s6 = ssub.s32 1, %s4
  %s7 = scalar_select 0, %s6, %s4
  $region1: #{tpu_custom_call.1} parent=0
    #allocation2 [shape = 'u8[512]{0}', space=smem, size = 0x200, scoped, tag = 'input window, operand 0, single buffered']
    #allocation3 [shape = 's32[1]{0}', space=sflag, size = 0x4, scoped, tag = 'scoped memory for tpu_custom_call.1']
    #allocation4 [shape = 's32[1]{0}', space=sflag, size = 0x4, scoped, tag = 'scoped memory for tpu_custom_call.1']
    #allocation5 [shape = 's32[1]{0}', space=sflag, size = 0x4, scoped, tag = 'scoped memory for tpu_custom_call.1']
    #allocation6 [shape = 'u8[4096]{0}', space=vmem, size = 0x1000, scoped, tag = 'input window, operand 1, single buffered']
    #allocation7 [shape = 'u8[4096]{0}', space=vmem, size = 0x1000, scoped, tag = 'input window, operand 2, single buffered']
    #allocation8 [shape = 's32[1]{0}', space=sflag, size = 0x4, scoped, tag = 'scoped memory for tpu_custom_call.1']
    #allocation9 [shape = 'u8[4096]{0}', space=vmem, size = 0x1000, scoped, tag = 'output window, operand 0, single buffered']
    %8 = vsyncpa [#allocation5], 0
    %9 = vsyncpa [#allocation3], 0
    %10 = vsyncpa [#allocation8], 0
    %11 = vsyncpa [#allocation4], 0
    // Predicated region
    $region2: #{tpu_custom_call.1} parent=1 // pred_check
      _
    $region3: #{tpu_custom_call.1} parent=1 // pred_check_branch
      %13 = sbr.rel (0) target = $region5
    $region4: #{tpu_custom_call.1} parent=1 // pred_region
      %s15 = ssub.s32 16, 16
      %16 = vsyncadd [#allocation5], %s15
      %19 = dma.hbm_to_smem %s0, 16, [#allocation2], [#allocation5]
    $region5: #{tpu_custom_call.1} parent=1 // pred_fallthru
      _
    // Predicated region
    $region6: #{tpu_custom_call.1} parent=1 // pred_check
      _
    $region7: #{tpu_custom_call.1} parent=1 // pred_check_branch
      %21 = sbr.rel (0) target = $region9
    $region8: #{tpu_custom_call.1} parent=1 // pred_region
      %s23 = ssub.s32 128, 128
      %24 = vsyncadd [#allocation3], %s23
      %s26 = sshll.u32 [#allocation6], 4
      %s27 = int_to_ptr.vmem [resolvable:$true] %s26
      %29 = dma.hbm_to_vmem [thread:$0]  %s1, 128, %s27, [#allocation3]
    $region9: #{tpu_custom_call.1} parent=1 // pred_fallthru
      _
    // Predicated region
    $region10: #{tpu_custom_call.1} parent=1 // pred_check
      _
    $region11: #{tpu_custom_call.1} parent=1 // pred_check_branch
      %31 = sbr.rel (0) target = $region13
    $region12: #{tpu_custom_call.1} parent=1 // pred_region
      %s33 = ssub.s32 128, 128
      %34 = vsyncadd [#allocation8], %s33
      %s36 = sshll.u32 [#allocation7], 4
      %s37 = int_to_ptr.vmem [resolvable:$true] %s36
      %39 = dma.hbm_to_vmem [thread:$0]  %s2, 128, %s37, [#allocation8]
    $region13: #{tpu_custom_call.1} parent=1 // pred_fallthru
      _
    // Predicated region
    $region14: #{tpu_custom_call.1} parent=1 // pred_check
      _
    $region15: #{tpu_custom_call.1} parent=1 // pred_check_branch
      %41 = sbr.rel (0) target = $region17
    $region16: #{tpu_custom_call.1} parent=1 // pred_region
      %42 = dma.done [#allocation5], 16
    $region17: #{tpu_custom_call.1} parent=1 // pred_fallthru
      _
    // Predicated region
    $region18: #{tpu_custom_call.1} parent=1 // pred_check
      _
    $region19: #{tpu_custom_call.1} parent=1 // pred_check_branch
      %44 = sbr.rel (0) target = $region21
    $region20: #{tpu_custom_call.1} parent=1 // pred_region
      %45 = dma.done [#allocation3], 128
    $region21: #{tpu_custom_call.1} parent=1 // pred_fallthru
      _
    // Predicated region
    $region22: #{tpu_custom_call.1} parent=1 // pred_check
      _
    $region23: #{tpu_custom_call.1} parent=1 // pred_check_branch
      %47 = sbr.rel (0) target = $region25
    $region24: #{tpu_custom_call.1} parent=1 // pred_region
      %48 = dma.done [#allocation8], 128
    $region25: #{tpu_custom_call.1} parent=1 // pred_fallthru
      _
    %49 = sfence
    %s50 = sld [smem:[#allocation2]]
    %s51 = sld [smem:[#allocation2 + $0x1]]
    %s52 = sld [smem:[#allocation2 + $0x2]]
    %s53 = sld [smem:[#allocation2 + $0x3]]
    %s54 = sld [smem:[#allocation2 + $0x4]]
    %s55 = sld [smem:[#allocation2 + $0x5]]
    %s56 = sld [smem:[#allocation2 + $0x6]]
    %s57 = sld [smem:[#allocation2 + $0x7]]
    %v58 = vld [vmem:[#allocation6] sm:$0xff]
    %v59 = vstv %s50
    %v60 = vsub.f32 %v58, %v59
    %v61 = vld [vmem:[#allocation7] sm:$0xff]
    %v62 = vstv %s51
    %v63 = vsub.f32 %v61, %v62
    %v64 = vstv %s52
    %v65 = vmul.f32 %v60, %v64
    %v66 = vstv %s53
    %v67 = vmul.f32 %v63, %v66
    %v68 = vsub.f32 %v65, %v67
    %v69 = vmul.f32 %v60, %v66
    %v70 = vmul.f32 %v63, %v64
    %v71 = vadd.f32 %v69, %v70
    %v72 = vmul.f32 %v68, %v68
    %v73 = vmul.f32 %v71, %v71
    %v74 = vadd.f32 %v72, %v73
    %v75 = vrsqrt.pop %v74
    %v76 = vmul.f32 %v74, %v75
    %vm77 = vcmp.eq.f32.partialorder %v74, inf
    %v78 = vsel %vm77, %v74, %v76
    %vm79 = vcmp.eq.f32.partialorder %v74, 0.0
    %v80 = vand.u32 %v74, 2147483648
    %v81 = vsel %vm79, %v80, %v78
    %v82 = vstv %s54
    %v83 = vmul.f32 %v82, %v73
    %v84 = vstv %s55
    %v85 = vmul.f32 %v84, %v72
    %v86 = vadd.f32 %v83, %v85
    %v87 = vrsqrt.pop %v86
    %v88 = vstv %s56
    %v89 = vmul.f32 %v88, %v87
    %v90 = vsub.f32 1.0, %v89
    %v91 = vmul.f32 %v81, %v90
    %s92 = ssub.f32 0.0, %s57
    %v93 = vstv %s92
    %v94 = vmul.f32 %v93, %v91
    %v95 = vsub.f32 0.0, %v94
    %v96 = vmax.f32 %v95, 0.0
    %vm97 = vcmp.ne.f32.partialorder %v95, %v95
    %v98 = vadd.f32 %v95, 0.0
    %v99 = vand.u32 2147483647, %v95
    %v100 = vsub.f32 0.0, %v99
    %v101 = vmul.f32 %v100, 1.442695
    %v102 = vpow.pop %v101
    %v103 = vadd.f32 %v102, 1.0
    %v104 = vlog2.pop %v103
    %v105 = vmul.f32 %v104, 0.6931472
    %v106 = vmul.f32 -0.5, %v102
    %v107 = vadd.f32 %v106, 1.0
    %v108 = vmul.f32 %v107, %v102
    %v109 = vand.u32 2147483647, %v102
    %vm110 = vcmp.lt.f32.partialorder %v109, 0.0004427343
    %v111 = vsel %vm110, %v108, %v105
    %v112 = vadd.f32 %v96, %v111
    %v113 = vsel %vm97, %v98, %v112
    %v114 = vsub.f32 0.0, %v113
    %115 = vst [vmem:[#allocation9] sm:$0xff] %v114
    // Predicated region
    $region26: #{tpu_custom_call.1} parent=1 // pred_check
      _
    $region27: #{tpu_custom_call.1} parent=1 // pred_check_branch
      %117 = sbr.rel (0) target = $region29
    $region28: #{tpu_custom_call.1} parent=1 // pred_region
      %s119 = ssub.s32 128, 128
      %120 = vsyncadd [#allocation4], %s119
      %s122 = sshll.u32 [#allocation9], 4
      %s123 = int_to_ptr.vmem [resolvable:$true] %s122
      %125 = dma.vmem_to_hbm [thread:$0]  %s123, 128, %s3, [#allocation4]
    $region29: #{tpu_custom_call.1} parent=1 // pred_fallthru
      _
    // Predicated region
    $region30: #{tpu_custom_call.1} parent=1 // pred_check
      _
    $region31: #{tpu_custom_call.1} parent=1 // pred_check_branch
      %127 = sbr.rel (0) target = $region33
    $region32: #{tpu_custom_call.1} parent=1 // pred_region
      %128 = dma.done [#allocation4], 128
    $region33: #{tpu_custom_call.1} parent=1 // pred_fallthru
      _
    %129 = vsyncpa [#allocation3], 1
    %130 = vsyncpa [#allocation8], 1
    %131 = vsyncpa [#allocation4], 1
    %132 = vsyncpa [#allocation5], 1

</llo_original>
